<compile_context>
chip_gen: v6e
topology: v6e:2x2x1
jax: 0.10.0
libtpu: 0.0.40
codegen_flags: <defaults>
</compile_context>

<pallas_src>
import numpy as np
import jax
import jax.numpy as jnp
from jax import lax
from jax.experimental import pallas as pl
from jax.experimental.pallas import tpu as pltpu

# Small, self-consistent shapes (the real vocab_size / sequence_length come from
# the Obama dataset, which we do not load).
S = 8      # sequence_length
B = 8      # batch_size  (matches the module)
V = 128    # vocab_size  (lane-aligned)
E = 32     # embedding_size (module uses 100; small here)
SB = S * B
START_IDX, END_IDX, PAD_IDX = 0, 1, 2

LOG_CLAMP = float(np.log(1e-20))   # clamp(policy, 1e-20, 1.0) -> max(logp, log(1e-20)); logp <= 0 always
NEG_INV_B = -1.0 / float(B)


def seqgan_policy_kernel(samples_ref, w_ref, bout_ref, rcn_ref, j_ref):
    """J = -(sum over (t,b) of log(clamp(policy)) * reward * code / num_elements) / B.

    samples_ref : (S*B, 1)    int32  flattened token ids
    w_ref       : (V, V)      bf16   fused embeddings @ w_out
    bout_ref    : (1, V)      f32    output bias
    rcn_ref     : (3, S*B, 1) f32    [reward, code, num_elements(broadcast over t)] flattened
    j_ref       : (1, 1)      f32    SMEM scalar output
    """
    samples = samples_ref[...]                                           # (SB, 1) int32

    # one-hot over the lane-dense vocab axis (torch: scatter_ value 1 along dim=2)
    iota_v = lax.broadcasted_iota(jnp.int32, (SB, V), 1)
    mask = iota_v == samples                                             # (SB, V) bool

    # logits = onehot @ (emb @ w_out) + b : single full-K=128 bf16 MXU pass, f32 accum.
    onehot_bf = mask.astype(jnp.bfloat16)
    logits = jnp.dot(onehot_bf, w_ref[...],
                     preferred_element_type=jnp.float32) + bout_ref[...]   # (SB, V) f32

    # Fused log-softmax gather: log(softmax(logits)[token]) without materializing preds.
    m = jnp.max(logits, axis=-1, keepdims=True)                          # (SB, 1)
    tok = jnp.sum(jnp.where(mask, logits, 0.0), axis=-1, keepdims=True)  # (SB, 1) gathered logit
    lse = jnp.log(jnp.sum(jnp.exp(logits - m), axis=-1, keepdims=True))  # (SB, 1)
    logp = jnp.maximum(tok - m - lse, LOG_CLAMP)                         # clamp(policy,1e-20,1.0) in log space

    reward = rcn_ref[0]                                                  # (SB, 1)
    code = rcn_ref[1]                                                    # (SB, 1)
    numel = rcn_ref[2]                                                   # (SB, 1)

    # J_temp summed: sum_{t,b} logp * reward * code / num_elements ; J = -(sum)/B
    weighted = logp * reward * code / numel                              # (SB, 1)
    j_ref[0, 0] = jnp.sum(weighted) * NEG_INV_B


def policy_gradient_objective(samples, w_fused_bf16, b_out, reward, code, num_elements):
    # Wrapper-side layout plumbing only: flatten to the lane/sublane-dense (S*B, 1)
    # domain and pack the three per-token weights into one slab so the kernel never
    # relays out between (S*B, .) and (S, B) and gets fewer DMA descriptors.
    samples_flat = samples.reshape(SB, 1).astype(jnp.int32)
    rcn = jnp.stack(
        [reward.reshape(SB, 1).astype(jnp.float32),
         code.reshape(SB, 1).astype(jnp.float32),
         jnp.broadcast_to(num_elements, (S, B)).reshape(SB, 1).astype(jnp.float32)],
        axis=0)                                                          # (3, SB, 1)

    vmem = pl.BlockSpec(memory_space=pltpu.MemorySpace.VMEM)
    cost = pl.CostEstimate(
        flops=2 * SB * V * V,                 # onehot @ W
        transcendentals=SB * V + SB,          # exp over logits + log of sums
        bytes_accessed=SB * 4 + V * V * 2 + V * 4 + 3 * SB * 4 + 4)

    out = pl.pallas_call(
        seqgan_policy_kernel,
        out_shape=jax.ShapeDtypeStruct((1, 1), jnp.float32),
        in_specs=[vmem, vmem, vmem, vmem],
        out_specs=pl.BlockSpec(memory_space=pltpu.MemorySpace.SMEM),
        cost_estimate=cost,
    )(samples_flat, w_fused_bf16, b_out, rcn)
    return out[0, 0]


policy_gradient_objective_jit = jax.jit(policy_gradient_objective)


class SEQGANsPallas:
    """Parameter container mirroring the shapes implied by SEQGANs.__init__ (scaled down)."""

    def __init__(self, key):
        self.l2_reg_lambda = 0.2
        self.batch_size = B
        self.sequence_length = S
        self.vocab_size = V
        self.embedding_size = E
        self.hidden_size_gru = E
        k1, k2 = jax.random.split(key, 2)
        emb = 0.1 * jax.random.normal(k1, (V, E), dtype=jnp.float32)
        # nn.Embedding(padding_idx=2): padding row is zero
        self.embeddings = emb.at[PAD_IDX].set(0.0)
        # deterministic output projection standing in for the Generator's vocab head
        self.w_out = 0.1 * jax.random.normal(k2, (E, V), dtype=jnp.float32)
        self.b_out = jnp.zeros((1, V), dtype=jnp.float32)
        # Fused V x V weight, computed ONCE, stored bf16 (valid because V is small;
        # at real vocab this must stay factored and be vocab-tiled).
        self.w_fused_bf16 = jnp.dot(self.embeddings, self.w_out).astype(jnp.bfloat16)

    def forward(self, x):
        # SEQGANs.forward(input) literally returns -1.
        return -1

    def backward_G_objective(self, samples, reward, code, num_elements):
        return policy_gradient_objective_jit(samples, self.w_fused_bf16, self.b_out,
                                             reward, code, num_elements)


def reference_j(samples, w_fused_bf16, b_out, reward, code, num_elements):
    # Same fused bf16 head as the kernel (so weights are bit-identical), but the
    # objective math follows the PyTorch backward_G formulation literally.
    w = w_fused_bf16.astype(jnp.float32)
    logits = w[samples] + b_out[0]                                       # (S, B, V)
    preds = jax.nn.softmax(logits, axis=-1)
    oh = jax.nn.one_hot(samples, V, dtype=jnp.float32)
    policy = jnp.sum(oh * preds, axis=2)                                 # (S, B)
    weighted = jnp.log(jnp.clip(policy, 1e-20, 1.0)) * reward * code
    j_temp = jnp.sum(weighted, axis=0) / num_elements[0]
    return -(jnp.sum(j_temp) / B)


if __name__ == "__main__":
    key = jax.random.PRNGKey(0)
    k_model, k_samp, k_rew = jax.random.split(key, 3)

    model = SEQGANsPallas(k_model)
    assert model.forward(None) == -1   # exact forward semantics

    # synthetic generated samples (seq_len x batch), then pad_data + generate_code semantics
    samples_np = np.array(jax.random.randint(k_samp, (S, B), 0, V), dtype=np.int32)
    record = {}
    for t in range(S):
        for b in range(B):
            if samples_np[t, b] == END_IDX and b not in record:
                record[b] = t
    for b, tb in record.items():               # pad_data
        for t in range(tb + 1, S):
            samples_np[t, b] = PAD_IDX
    code_np = np.ones((S, B), dtype=np.float32)      # generate_code
    numel_np = np.full((1, B), float(S), dtype=np.float32)
    for b, tb in record.items():
        numel_np[0, b] = float(tb + 1)
        for t in range(tb, S - 1):
            code_np[t, b] = 0.0

    samples = jnp.asarray(samples_np)
    code = jnp.asarray(code_np)
    num_elements = jnp.asarray(numel_np)
    reward = jax.random.normal(k_rew, (S, B), dtype=jnp.float32)         # stand-in for D rollout rewards

    j_kernel = model.backward_G_objective(samples, reward, code, num_elements)
    j_kernel = jax.block_until_ready(j_kernel)

    j_ref = reference_j(samples, model.w_fused_bf16, model.b_out,
                        reward, code, num_elements)
    np.testing.assert_allclose(np.asarray(j_kernel), np.asarray(j_ref), rtol=1e-5, atol=1e-5)

    print("KERNEL_OK")
</pallas_src>

<mosaic_0001>
module attributes {stable_mosaic.version = 11 : i64} {
  func.func @seqgan_policy_kernel(%arg0: memref<64x1xi32, #tpu.memory_space<vmem>>, %arg1: memref<128x128xbf16, #tpu.memory_space<vmem>>, %arg2: memref<1x128xf32, #tpu.memory_space<vmem>>, %arg3: memref<3x64x1xf32, #tpu.memory_space<vmem>>, %arg4: memref<1x1xf32, #tpu.memory_space<smem>>) attributes {dimension_semantics = [], scalar_prefetch = 0 : i64, scratch_operands = 0 : i64, tpu.core_type = #tpu.core_type<tc>} {
    %c0 = arith.constant 0 : index
    %c0_0 = arith.constant 0 : index
    %0 = vector.load %arg0[%c0, %c0_0] : memref<64x1xi32, #tpu.memory_space<vmem>>, vector<64x1xi32>
    %1 = tpu.iota {dimensions = array<i32: 1>} : vector<64x128xi32>
    %2 = vector.broadcast %0 : vector<64x1xi32> to vector<64x128xi32>
    %3 = arith.cmpi eq, %1, %2 : vector<64x128xi32>
    %4 = arith.extui %3 : vector<64x128xi1> to vector<64x128xi32>
    %5 = arith.sitofp %4 : vector<64x128xi32> to vector<64x128xf32>
    %6 = arith.truncf %5 : vector<64x128xf32> to vector<64x128xbf16>
    %c0_1 = arith.constant 0 : index
    %c0_2 = arith.constant 0 : index
    %7 = vector.load %arg1[%c0_1, %c0_2] : memref<128x128xbf16, #tpu.memory_space<vmem>>, vector<128x128xbf16>
    %cst = arith.constant dense<0.000000e+00> : vector<64x128xf32>
    %8 = tpu.matmul %6, %7, %cst {dimension_numbers = #tpu.dot_dimension_numbers<[1], [0], [0], [1], [0, 0, 1, 1], [], []>} : vector<64x128xbf16>, vector<128x128xbf16>, vector<64x128xf32> -> vector<64x128xf32>
    %c0_3 = arith.constant 0 : index
    %c0_4 = arith.constant 0 : index
    %9 = vector.load %arg2[%c0_3, %c0_4] : memref<1x128xf32, #tpu.memory_space<vmem>>, vector<1x128xf32>
    %10 = vector.broadcast %9 : vector<1x128xf32> to vector<64x128xf32>
    %11 = arith.addf %8, %10 : vector<64x128xf32>
    %cst_5 = arith.constant dense<0xFF800000> : vector<64xf32>
    %12 = vector.multi_reduction <maximumf>, %11, %cst_5 [1] : vector<64x128xf32> to vector<64xf32>
    %13 = vector.shape_cast %12 : vector<64xf32> to vector<64x1xf32>
    %cst_6 = arith.constant 0.000000e+00 : f32
    %14 = vector.broadcast %cst_6 : f32 to vector<64x128xf32>
    %15 = arith.select %3, %11, %14 : vector<64x128xi1>, vector<64x128xf32>
    %cst_7 = arith.constant dense<0.000000e+00> : vector<64xf32>
    %16 = vector.multi_reduction <add>, %15, %cst_7 [1] : vector<64x128xf32> to vector<64xf32>
    %17 = vector.shape_cast %16 : vector<64xf32> to vector<64x1xf32>
    %18 = vector.broadcast %13 : vector<64x1xf32> to vector<64x128xf32>
    %19 = arith.subf %11, %18 : vector<64x128xf32>
    %20 = math.exp %19 : vector<64x128xf32>
    %cst_8 = arith.constant dense<0.000000e+00> : vector<64xf32>
    %21 = vector.multi_reduction <add>, %20, %cst_8 [1] : vector<64x128xf32> to vector<64xf32>
    %22 = vector.shape_cast %21 : vector<64xf32> to vector<64x1xf32>
    %23 = math.log %22 : vector<64x1xf32>
    %24 = arith.subf %17, %13 : vector<64x1xf32>
    %25 = arith.subf %24, %23 : vector<64x1xf32>
    %cst_9 = arith.constant -4.605170e+01 : f32
    %26 = vector.broadcast %cst_9 : f32 to vector<64x1xf32>
    %27 = arith.maximumf %25, %26 : vector<64x1xf32>
    %c0_10 = arith.constant 0 : index
    %c0_11 = arith.constant 0 : index
    %c0_12 = arith.constant 0 : index
    %28 = vector.load %arg3[%c0_10, %c0_11, %c0_12] : memref<3x64x1xf32, #tpu.memory_space<vmem>>, vector<1x64x1xf32>
    %29 = vector.shape_cast %28 : vector<1x64x1xf32> to vector<64x1xf32>
    %c1 = arith.constant 1 : index
    %c0_13 = arith.constant 0 : index
    %c0_14 = arith.constant 0 : index
    %30 = vector.load %arg3[%c1, %c0_13, %c0_14] : memref<3x64x1xf32, #tpu.memory_space<vmem>>, vector<1x64x1xf32>
    %31 = vector.shape_cast %30 : vector<1x64x1xf32> to vector<64x1xf32>
    %c2 = arith.constant 2 : index
    %c0_15 = arith.constant 0 : index
    %c0_16 = arith.constant 0 : index
    %32 = vector.load %arg3[%c2, %c0_15, %c0_16] : memref<3x64x1xf32, #tpu.memory_space<vmem>>, vector<1x64x1xf32>
    %33 = vector.shape_cast %32 : vector<1x64x1xf32> to vector<64x1xf32>
    %34 = arith.mulf %27, %29 : vector<64x1xf32>
    %35 = arith.mulf %34, %31 : vector<64x1xf32>
    %36 = arith.divf %35, %33 : vector<64x1xf32>
    %37 = vector.shape_cast %36 : vector<64x1xf32> to vector<1x64x1xf32>
    %cst_17 = arith.constant dense<0.000000e+00> : vector<1xf32>
    %38 = vector.multi_reduction <add>, %37, %cst_17 [1, 2] : vector<1x64x1xf32> to vector<1xf32>
    %39 = vector.shape_cast %38 : vector<1xf32> to vector<1x1x1xf32>
    %40 = vector.extract %39[0, 0, 0] : f32 from vector<1x1x1xf32>
    %cst_18 = arith.constant -1.250000e-01 : f32
    %41 = arith.mulf %40, %cst_18 : f32
    %c0_19 = arith.constant 0 : index
    %c0_20 = arith.constant 0 : index
    %42 = memref.load %arg4[%c0_19, %c0_20] : memref<1x1xf32, #tpu.memory_space<smem>>
    memref.store %41, %arg4[%c0_19, %c0_20] : memref<1x1xf32, #tpu.memory_space<smem>>
    return
  }
}

</mosaic_0001>

<llo_original>
// kernel: policy_gradient_objective.1
$region0: #{policy_gradient_objective.1}
  #allocation0 [shape = 'u32[]', space=smem, size = 0x4, offset = 0x4, fixed_abs, tag = 'smem constant byte address 0x4 - core index']
  #allocation1 [shape = 'u32[144,128]{1,0:T(1,128)}', space=vmem, size = 0x12000, scoped, tag = 'internal scratch']
  %s0 = inlined_call_operand.vmem [shape: s32[64,1], index: 0, kind: input, shape index: {}]
  %s1 = inlined_call_operand.vmem [shape: bf16[128,128], index: 1, kind: input, shape index: {}]
  %s2 = inlined_call_operand.vmem [shape: f32[1,128], index: 2, kind: input, shape index: {}]
  %s3 = inlined_call_operand.vmem [shape: f32[3,64,1], index: 3, kind: input, shape index: {}]
  %s4 = inlined_call_operand.hbm [shape: f32[1,1], index: 4, kind: output, shape index: {}]
  %s5 = sld [smem:[#allocation0]]
  $region26: #{policy_gradient_objective.1} parent=0
    _
  %s7 = ssub.s32 1, %s5
  %s8 = scalar_select 0, %s7, %s5
  $region1: #{policy_gradient_objective.1} parent=0
    #allocation2 [shape = 'u8[512]{0}', space=smem, size = 0x200, scoped, tag = 'output window, operand 0, single buffered']
    #allocation3 [shape = 's32[1]{0}', space=sflag, size = 0x4, scoped, tag = 'scoped memory for policy_gradient_objective.1']
    %9 = vsyncpa [#allocation3], 0
    // Predicated region
    $region2: #{policy_gradient_objective.1} parent=1 // pred_check
      _
    $region3: #{policy_gradient_objective.1} parent=1 // pred_check_branch
      %11 = sbr.rel (0) target = $region5
    $region4: #{policy_gradient_objective.1} parent=1 // pred_region
      _
    $region5: #{policy_gradient_objective.1} parent=1 // pred_fallthru
      _
    // Predicated region
    $region6: #{policy_gradient_objective.1} parent=1 // pred_check
      _
    $region7: #{policy_gradient_objective.1} parent=1 // pred_check_branch
      %13 = sbr.rel (0) target = $region9
    $region8: #{policy_gradient_objective.1} parent=1 // pred_region
      _
    $region9: #{policy_gradient_objective.1} parent=1 // pred_fallthru
      _
    // Predicated region
    $region10: #{policy_gradient_objective.1} parent=1 // pred_check
      _
    $region11: #{policy_gradient_objective.1} parent=1 // pred_check_branch
      %15 = sbr.rel (0) target = $region13
    $region12: #{policy_gradient_objective.1} parent=1 // pred_region
      _
    $region13: #{policy_gradient_objective.1} parent=1 // pred_fallthru
      _
    // Predicated region
    $region14: #{policy_gradient_objective.1} parent=1 // pred_check
      _
    $region15: #{policy_gradient_objective.1} parent=1 // pred_check_branch
      %17 = sbr.rel (0) target = $region17
    $region16: #{policy_gradient_objective.1} parent=1 // pred_region
      _
    $region17: #{policy_gradient_objective.1} parent=1 // pred_fallthru
      _
    %v19 = vld [vmem:[%s0] sm:$0xff]
    %v20 = vld [vmem:[%s0 + $0x8] sm:$0xff]
    %v21 = vld [vmem:[%s0 + $0x10] sm:$0xff]
    %v22 = vld [vmem:[%s0 + $0x18] sm:$0xff]
    %v23 = vld [vmem:[%s0 + $0x20] sm:$0xff]
    %v24 = vld [vmem:[%s0 + $0x28] sm:$0xff]
    %v25 = vld [vmem:[%s0 + $0x30] sm:$0xff]
    %v26 = vld [vmem:[%s0 + $0x38] sm:$0xff]
    %v27 = vlaneseq
    %v28 = vand.u32 %v27, 127
    %29 = vset.pattern.permute.xlu0 0
    %30 = vperm.xlu0 %29, %v19
    %v31 = vpop.permute.xlu0 %30
    %32 = vset.pattern.permute.xlu0 0
    %33 = vperm.xlu0 %32, %v20
    %v34 = vpop.permute.xlu0 %33
    %35 = vset.pattern.permute.xlu0 0
    %36 = vperm.xlu0 %35, %v21
    %v37 = vpop.permute.xlu0 %36
    %38 = vset.pattern.permute.xlu0 0
    %39 = vperm.xlu0 %38, %v22
    %v40 = vpop.permute.xlu0 %39
    %41 = vset.pattern.permute.xlu0 0
    %42 = vperm.xlu0 %41, %v23
    %v43 = vpop.permute.xlu0 %42
    %44 = vset.pattern.permute.xlu0 0
    %45 = vperm.xlu0 %44, %v24
    %v46 = vpop.permute.xlu0 %45
    %47 = vset.pattern.permute.xlu0 0
    %48 = vperm.xlu0 %47, %v25
    %v49 = vpop.permute.xlu0 %48
    %50 = vset.pattern.permute.xlu0 0
    %51 = vperm.xlu0 %50, %v26
    %v52 = vpop.permute.xlu0 %51
    %vm53 = vcmp.eq.s32.totalorder %v28, %v31
    %vm54 = vcmp.eq.s32.totalorder %v28, %v34
    %vm55 = vcmp.eq.s32.totalorder %v28, %v37
    %vm56 = vcmp.eq.s32.totalorder %v28, %v40
    %vm57 = vcmp.eq.s32.totalorder %v28, %v43
    %vm58 = vcmp.eq.s32.totalorder %v28, %v46
    %vm59 = vcmp.eq.s32.totalorder %v28, %v49
    %vm60 = vcmp.eq.s32.totalorder %v28, %v52
    %v61 = vsel %vm53, 1, 0
    %v62 = vsel %vm54, 1, 0
    %v63 = vsel %vm55, 1, 0
    %v64 = vsel %vm56, 1, 0
    %v65 = vsel %vm57, 1, 0
    %v66 = vsel %vm58, 1, 0
    %v67 = vsel %vm59, 1, 0
    %v68 = vsel %vm60, 1, 0
    %v69 = vcvt.s32.f32 %v61
    %v70 = vcvt.s32.f32 %v62
    %v71 = vcvt.s32.f32 %v63
    %v72 = vcvt.s32.f32 %v64
    %v73 = vcvt.s32.f32 %v65
    %v74 = vcvt.s32.f32 %v66
    %v75 = vcvt.s32.f32 %v67
    %v76 = vcvt.s32.f32 %v68
    %v77 = vpack.c.bf16 %v70, %v69
    %v78 = vpack.c.bf16 %v72, %v71
    %v79 = vpack.c.bf16 %v74, %v73
    %v80 = vpack.c.bf16 %v76, %v75
    %v81 = vld [vmem:[%s1] sm:$0xf]
    %v82 = vld [vmem:[%s1 + $0x4] sm:$0xf]
    %v83 = vld [vmem:[%s1 + $0x8] sm:$0xf]
    %v84 = vld [vmem:[%s1 + $0xc] sm:$0xf]
    %v85 = vld [vmem:[%s1 + $0x10] sm:$0xf]
    %v86 = vld [vmem:[%s1 + $0x14] sm:$0xf]
    %v87 = vld [vmem:[%s1 + $0x18] sm:$0xf]
    %v88 = vld [vmem:[%s1 + $0x1c] sm:$0xf]
    %v89 = vld [vmem:[%s1 + $0x20] sm:$0xf]
    %v90 = vld [vmem:[%s1 + $0x24] sm:$0xf]
    %v91 = vld [vmem:[%s1 + $0x28] sm:$0xf]
    %v92 = vld [vmem:[%s1 + $0x2c] sm:$0xf]
    %v93 = vld [vmem:[%s1 + $0x30] sm:$0xf]
    %v94 = vld [vmem:[%s1 + $0x34] sm:$0xf]
    %v95 = vld [vmem:[%s1 + $0x38] sm:$0xf]
    %v96 = vld [vmem:[%s1 + $0x3c] sm:$0xf]
    %v97 = vld [vmem:[%s2] sm:$0x1]
    %v99 = vlaneseq
    %v100 = vshrl.u32 %v99, 7
    %v101 = vsub.s32 0, %v100
    %v102 = vrot.slane %v97, %v101
    %v120 = vunpack.c.l.b16 %v81
    %v121 = vunpack.c.l.b16 %v82
    %v122 = vunpack.c.l.b16 %v83
    %v123 = vunpack.c.l.b16 %v84
    %v124 = vunpack.c.l.b16 %v85
    %v125 = vunpack.c.l.b16 %v86
    %v126 = vunpack.c.l.b16 %v87
    %v127 = vunpack.c.l.b16 %v88
    %v128 = vunpack.c.l.b16 %v89
    %v129 = vunpack.c.l.b16 %v90
    %v130 = vunpack.c.l.b16 %v91
    %v131 = vunpack.c.l.b16 %v92
    %v132 = vunpack.c.l.b16 %v93
    %v133 = vunpack.c.l.b16 %v94
    %v134 = vunpack.c.l.b16 %v95
    %v135 = vunpack.c.l.b16 %v96
    %v136 = vpack.c.b16 %v121, %v120
    %v137 = vpack.c.b16 %v123, %v122
    %v138 = vpack.c.b16 %v125, %v124
    %v139 = vpack.c.b16 %v127, %v126
    %v140 = vpack.c.b16 %v129, %v128
    %v141 = vpack.c.b16 %v131, %v130
    %v142 = vpack.c.b16 %v133, %v132
    %v143 = vpack.c.b16 %v135, %v134
    %152 = vmatprep.subr.bf16.mxu0 0
    %153 = vmatpush1.bf16.msra.mxu0 %v143
    %154 = vmatprep.subr.bf16.mxu0 0
    %155 = vmatpush1.bf16.msra.mxu0 %v142
    %156 = vmatprep.subr.bf16.mxu0 0
    %157 = vmatpush1.bf16.msra.mxu0 %v141
    %158 = vmatprep.subr.bf16.mxu0 0
    %159 = vmatpush1.bf16.msra.mxu0 %v140
    %160 = vmatprep.subr.bf16.mxu0 0
    %161 = vmatpush1.bf16.msra.mxu0 %v139
    %162 = vmatprep.subr.bf16.mxu0 0
    %163 = vmatpush1.bf16.msra.mxu0 %v138
    %164 = vmatprep.subr.bf16.mxu0 0
    %165 = vmatpush1.bf16.msra.mxu0 %v137
    %166 = vmatprep.subr.bf16.mxu0 0
    %167 = vmatpush1.bf16.msra.mxu0 %v136
    %168 = vmatprep.subr.bf16.mxu0 0
    %169 = vmatpush2.bf16.msra.mxu0 0
    %170 = vmatprep.subr.bf16.mxu0 0
    %171 = vmatpush2.bf16.msra.mxu0 0
    %172 = vmatprep.subr.bf16.mxu0 0
    %173 = vmatpush2.bf16.msra.mxu0 0
    %174 = vmatprep.subr.bf16.mxu0 0
    %175 = vmatpush2.bf16.msra.mxu0 0
    %176 = vmatprep.subr.bf16.mxu0 0
    %177 = vmatpush2.bf16.msra.mxu0 0
    %178 = vmatprep.subr.bf16.mxu0 0
    %179 = vmatpush2.bf16.msra.mxu0 0
    %180 = vmatprep.subr.bf16.mxu0 0
    %181 = vmatpush2.bf16.msra.mxu0 0
    %182 = vmatprep.subr.bf16.mxu0 0
    %183 = vmatpush2.bf16.msra.mxu0 0
    %184 = vmatprep.mubr.bf16.mxu0 0
    %185 = vmatmul.mubr.bf16.gmra.mxu0 %v77
    %v186 = vpop.f32.mrf.mxu0
    %v187 = vadd.f32 %v102, %v186
    %v188 = vpop.f32.mrf.mxu0
    %v189 = vpop.f32.mrf.mxu0
    %v190 = vadd.f32 %v102, %v189
    %v191 = vpop.f32.mrf.mxu0
    %192 = vmatprep.mubr.bf16.mxu0 0
    %193 = vmatmul.mubr.bf16.gmra.mxu0 %v78
    %v194 = vpop.f32.mrf.mxu0
    %v195 = vadd.f32 %v102, %v194
    %v196 = vpop.f32.mrf.mxu0
    %v197 = vpop.f32.mrf.mxu0
    %v198 = vadd.f32 %v102, %v197
    %v199 = vpop.f32.mrf.mxu0
    %200 = vmatprep.mubr.bf16.mxu0 0
    %201 = vmatmul.mubr.bf16.gmra.mxu0 %v79
    %v202 = vpop.f32.mrf.mxu0
    %v203 = vadd.f32 %v102, %v202
    %v204 = vpop.f32.mrf.mxu0
    %v205 = vpop.f32.mrf.mxu0
    %v206 = vadd.f32 %v102, %v205
    %v207 = vpop.f32.mrf.mxu0
    %208 = vmatprep.mubr.bf16.mxu0 0
    %209 = vmatmul.mubr.bf16.gmra.mxu0 %v80
    %v210 = vpop.f32.mrf.mxu0
    %v211 = vadd.f32 %v102, %v210
    %v212 = vpop.f32.mrf.mxu0
    %v213 = vpop.f32.mrf.mxu0
    %v214 = vadd.f32 %v102, %v213
    %v215 = vpop.f32.mrf.mxu0
    %216 = vdwg.mxu0
    %217 = vmax.xlane.f32.xlu0 %v187
    %v218 = vpop.xlane.xlu0 %217
    %219 = vmax.xlane.f32.xlu0 %v190
    %v220 = vpop.xlane.xlu0 %219
    %221 = vmax.xlane.f32.xlu0 %v195
    %v222 = vpop.xlane.xlu0 %221
    %223 = vmax.xlane.f32.xlu0 %v198
    %v224 = vpop.xlane.xlu0 %223
    %225 = vmax.xlane.f32.xlu0 %v203
    %v226 = vpop.xlane.xlu0 %225
    %227 = vmax.xlane.f32.xlu0 %v206
    %v228 = vpop.xlane.xlu0 %227
    %229 = vmax.xlane.f32.xlu0 %v211
    %v230 = vpop.xlane.xlu0 %229
    %231 = vmax.xlane.f32.xlu0 %v214
    %v232 = vpop.xlane.xlu0 %231
    %v233 = vsel %vm53, %v187, 0.0
    %v234 = vsel %vm54, %v190, 0.0
    %v235 = vsel %vm55, %v195, 0.0
    %v236 = vsel %vm56, %v198, 0.0
    %v237 = vsel %vm57, %v203, 0.0
    %v238 = vsel %vm58, %v206, 0.0
    %v239 = vsel %vm59, %v211, 0.0
    %v240 = vsel %vm60, %v214, 0.0
    %241 = vadd.xlane.f32.xlu0 %v233
    %v242 = vpop.xlane.xlu0 %241
    %243 = vadd.xlane.f32.xlu0 %v234
    %v244 = vpop.xlane.xlu0 %243
    %245 = vadd.xlane.f32.xlu0 %v235
    %v246 = vpop.xlane.xlu0 %245
    %247 = vadd.xlane.f32.xlu0 %v236
    %v248 = vpop.xlane.xlu0 %247
    %249 = vadd.xlane.f32.xlu0 %v237
    %v250 = vpop.xlane.xlu0 %249
    %251 = vadd.xlane.f32.xlu0 %v238
    %v252 = vpop.xlane.xlu0 %251
    %253 = vadd.xlane.f32.xlu0 %v239
    %v254 = vpop.xlane.xlu0 %253
    %255 = vadd.xlane.f32.xlu0 %v240
    %v256 = vpop.xlane.xlu0 %255
    %v257 = vsub.f32 %v187, %v218
    %v258 = vsub.f32 %v190, %v220
    %v259 = vsub.f32 %v195, %v222
    %v260 = vsub.f32 %v198, %v224
    %v261 = vsub.f32 %v203, %v226
    %v262 = vsub.f32 %v206, %v228
    %v263 = vsub.f32 %v211, %v230
    %v264 = vsub.f32 %v214, %v232
    %v265 = vmul.f32 %v257, 1.442695
    %v266 = vpow.pop %v265
    %v267 = vmul.f32 %v258, 1.442695
    %v268 = vpow.pop %v267
    %v269 = vmul.f32 %v259, 1.442695
    %v270 = vpow.pop %v269
    %v271 = vmul.f32 %v260, 1.442695
    %v272 = vpow.pop %v271
    %v273 = vmul.f32 %v261, 1.442695
    %v274 = vpow.pop %v273
    %v275 = vmul.f32 %v262, 1.442695
    %v276 = vpow.pop %v275
    %v277 = vmul.f32 %v263, 1.442695
    %v278 = vpow.pop %v277
    %v279 = vmul.f32 %v264, 1.442695
    %v280 = vpow.pop %v279
    %281 = vadd.xlane.f32.xlu0 %v266
    %v282 = vpop.xlane.xlu0 %281
    %283 = vadd.xlane.f32.xlu0 %v268
    %v284 = vpop.xlane.xlu0 %283
    %285 = vadd.xlane.f32.xlu0 %v270
    %v286 = vpop.xlane.xlu0 %285
    %287 = vadd.xlane.f32.xlu0 %v272
    %v288 = vpop.xlane.xlu0 %287
    %289 = vadd.xlane.f32.xlu0 %v274
    %v290 = vpop.xlane.xlu0 %289
    %291 = vadd.xlane.f32.xlu0 %v276
    %v292 = vpop.xlane.xlu0 %291
    %293 = vadd.xlane.f32.xlu0 %v278
    %v294 = vpop.xlane.xlu0 %293
    %295 = vadd.xlane.f32.xlu0 %v280
    %v296 = vpop.xlane.xlu0 %295
    %v297 = vlog2.pop %v282
    %v298 = vmul.f32 %v297, 0.6931472
    %v299 = vlog2.pop %v284
    %v300 = vmul.f32 %v299, 0.6931472
    %v301 = vlog2.pop %v286
    %v302 = vmul.f32 %v301, 0.6931472
    %v303 = vlog2.pop %v288
    %v304 = vmul.f32 %v303, 0.6931472
    %v305 = vlog2.pop %v290
    %v306 = vmul.f32 %v305, 0.6931472
    %v307 = vlog2.pop %v292
    %v308 = vmul.f32 %v307, 0.6931472
    %v309 = vlog2.pop %v294
    %v310 = vmul.f32 %v309, 0.6931472
    %v311 = vlog2.pop %v296
    %v312 = vmul.f32 %v311, 0.6931472
    %v313 = vsub.f32 %v242, %v218
    %v314 = vsub.f32 %v244, %v220
    %v315 = vsub.f32 %v246, %v222
    %v316 = vsub.f32 %v248, %v224
    %v317 = vsub.f32 %v250, %v226
    %v318 = vsub.f32 %v252, %v228
    %v319 = vsub.f32 %v254, %v230
    %v320 = vsub.f32 %v256, %v232
    %v321 = vsub.f32 %v313, %v298
    %v322 = vsub.f32 %v314, %v300
    %v323 = vsub.f32 %v315, %v302
    %v324 = vsub.f32 %v316, %v304
    %v325 = vsub.f32 %v317, %v306
    %v326 = vsub.f32 %v318, %v308
    %v327 = vsub.f32 %v319, %v310
    %v328 = vsub.f32 %v320, %v312
    %v329 = vmax.f32 %v321, -46.0517
    %v330 = vmax.f32 %v322, -46.0517
    %v331 = vmax.f32 %v323, -46.0517
    %v332 = vmax.f32 %v324, -46.0517
    %v333 = vmax.f32 %v325, -46.0517
    %v334 = vmax.f32 %v326, -46.0517
    %v335 = vmax.f32 %v327, -46.0517
    %v336 = vmax.f32 %v328, -46.0517
    %v337 = vld [vmem:[%s3] sm:$0xff]
    %v338 = vld [vmem:[%s3 + $0x8] sm:$0xff]
    %v339 = vld [vmem:[%s3 + $0x10] sm:$0xff]
    %v340 = vld [vmem:[%s3 + $0x18] sm:$0xff]
    %v341 = vld [vmem:[%s3 + $0x20] sm:$0xff]
    %v342 = vld [vmem:[%s3 + $0x28] sm:$0xff]
    %v343 = vld [vmem:[%s3 + $0x30] sm:$0xff]
    %v344 = vld [vmem:[%s3 + $0x38] sm:$0xff]
    %s345 = scalar_lea.vmem %s3, 64
    %v346 = vld [vmem:[%s345] sm:$0xff]
    %v347 = vld [vmem:[%s345 + $0x8] sm:$0xff]
    %v348 = vld [vmem:[%s345 + $0x10] sm:$0xff]
    %v349 = vld [vmem:[%s345 + $0x18] sm:$0xff]
    %v350 = vld [vmem:[%s345 + $0x20] sm:$0xff]
    %v351 = vld [vmem:[%s345 + $0x28] sm:$0xff]
    %v352 = vld [vmem:[%s345 + $0x30] sm:$0xff]
    %v353 = vld [vmem:[%s345 + $0x38] sm:$0xff]
    %s354 = scalar_lea.vmem %s3, 128
    %v355 = vld [vmem:[%s354] sm:$0xff]
    %v356 = vld [vmem:[%s354 + $0x8] sm:$0xff]
    %v357 = vld [vmem:[%s354 + $0x10] sm:$0xff]
    %v358 = vld [vmem:[%s354 + $0x18] sm:$0xff]
    %v359 = vld [vmem:[%s354 + $0x20] sm:$0xff]
    %v360 = vld [vmem:[%s354 + $0x28] sm:$0xff]
    %v361 = vld [vmem:[%s354 + $0x30] sm:$0xff]
    %v362 = vld [vmem:[%s354 + $0x38] sm:$0xff]
    %v363 = vmul.f32 %v329, %v337
    %v364 = vmul.f32 %v330, %v338
    %v365 = vmul.f32 %v331, %v339
    %v366 = vmul.f32 %v332, %v340
    %v367 = vmul.f32 %v333, %v341
    %v368 = vmul.f32 %v334, %v342
    %v369 = vmul.f32 %v335, %v343
    %v370 = vmul.f32 %v336, %v344
    %v371 = vmul.f32 %v363, %v346
    %v372 = vmul.f32 %v364, %v347
    %v373 = vmul.f32 %v365, %v348
    %v374 = vmul.f32 %v366, %v349
    %v375 = vmul.f32 %v367, %v350
    %v376 = vmul.f32 %v368, %v351
    %v377 = vmul.f32 %v369, %v352
    %v378 = vmul.f32 %v370, %v353
    %v379 = vrcp.pop %v355
    %v380 = vmul.f32 %v371, %v379
    %v381 = vrcp.pop %v356
    %v382 = vmul.f32 %v372, %v381
    %v383 = vrcp.pop %v357
    %v384 = vmul.f32 %v373, %v383
    %v385 = vrcp.pop %v358
    %v386 = vmul.f32 %v374, %v385
    %v387 = vrcp.pop %v359
    %v388 = vmul.f32 %v375, %v387
    %v389 = vrcp.pop %v360
    %v390 = vmul.f32 %v376, %v389
    %v391 = vrcp.pop %v361
    %v392 = vmul.f32 %v377, %v391
    %v393 = vrcp.pop %v362
    %v394 = vmul.f32 %v378, %v393
    %vm395 = vcmask 7168
    %v396 = vsel %vm395, %v380, 0.0
    %v397 = vsel %vm395, %v382, 0.0
    %v398 = vadd.f32 %v396, %v397
    %v399 = vsel %vm395, %v384, 0.0
    %v400 = vadd.f32 %v398, %v399
    %v401 = vsel %vm395, %v386, 0.0
    %v402 = vadd.f32 %v400, %v401
    %v403 = vsel %vm395, %v388, 0.0
    %v404 = vadd.f32 %v402, %v403
    %v405 = vsel %vm395, %v390, 0.0
    %v406 = vadd.f32 %v404, %v405
    %v407 = vsel %vm395, %v392, 0.0
    %v408 = vadd.f32 %v406, %v407
    %v409 = vsel %vm395, %v394, 0.0
    %v410 = vadd.f32 %v408, %v409
    %411 = vadd.xlane.f32.xlu0 %v410
    %v412 = vpop.xlane.xlu0 %411
    %v413 = vrot.slane %v412, 4
    %v414 = vadd.f32 %v412, %v413
    %v415 = vrot.slane %v414, 2
    %v416 = vadd.f32 %v414, %v415
    %v417 = vrot.slane %v416, 1
    %v418 = vadd.f32 %v416, %v417
    %s419 = vtos %v418
    %s420 = smul.f32 %s419, -0.125
    %s421 = scalar_lea.smem [#allocation2], 0
    %422 = sst [smem:[%s421]] %s420
    // Predicated region
    $region18: #{policy_gradient_objective.1} parent=1 // pred_check
      _
    $region19: #{policy_gradient_objective.1} parent=1 // pred_check_branch
      %424 = sbr.rel (0) target = $region21
    $region20: #{policy_gradient_objective.1} parent=1 // pred_region
      %s426 = ssub.s32 16, 16
      %427 = vsyncadd [#allocation3], %s426
      %430 = dma.smem_to_hbm [#allocation2], 16, %s4, [#allocation3]
    $region21: #{policy_gradient_objective.1} parent=1 // pred_fallthru
      _
    // Predicated region
    $region22: #{policy_gradient_objective.1} parent=1 // pred_check
      _
    $region23: #{policy_gradient_objective.1} parent=1 // pred_check_branch
      %432 = sbr.rel (0) target = $region25
    $region24: #{policy_gradient_objective.1} parent=1 // pred_region
      %433 = dma.done [#allocation3], 16
    $region25: #{policy_gradient_objective.1} parent=1 // pred_fallthru
      _
    %434 = sfence
    %435 = vsyncpa [#allocation3], 1

</llo_original>
